<compile_context>
chip_gen: v5e
topology: v5e:2x2
jax: 0.10.0
libtpu: 0.0.40
codegen_flags: <defaults>
</compile_context>

<pallas_src>
import jax
import jax.numpy as jnp
from jax.experimental import pallas as pl
from jax.experimental.pallas import tpu as pltpu

# ~4 MiB per block: 2 bufs x (in + out) x 4 MiB = 16 MiB < 32 MiB scoped VMEM.
_TARGET_BLOCK_BYTES = 4 * 1024 * 1024
_VMEM_LIMIT_BYTES = 32 * 1024 * 1024


def _mish_kernel(x_ref, o_ref):
    x = x_ref[...].astype(jnp.float32)
    # tanh(softplus(x)) = tanh(log(1+e^x)) = (e^{2x} + 2e^x) / (e^{2x} + 2e^x + 2)
    # Stabilized with u = exp(-|x|) (single transcendental):
    #   x >= 0: (1 + 2u) / (1 + 2u + 2u^2)
    #   x <  0: (u^2 + 2u) / (u^2 + 2u + 2)
    u = jnp.exp(-jnp.abs(x))
    u2 = u * u
    pos = x >= 0.0
    num = jnp.where(pos, 1.0 + 2.0 * u, u2 + 2.0 * u)
    den = num + jnp.where(pos, 2.0 * u2, 2.0)
    # den is in [1, 5] (never near 0). EUP approximate reciprocal + one
    # Newton-Raphson refinement: relative error ~1e-7, far inside 1e-5 tol,
    # and cheaper on the VALU than a full-precision divide sequence.
    r = pl.reciprocal(den, approx=True)
    r = r * (2.0 - den * r)
    y = x * num * r
    o_ref[...] = y.astype(o_ref.dtype)


def _sublane_multiple(dtype) -> int:
    """Sublane packing granularity per dtype (rows of a packed vreg)."""
    return {4: 8, 2: 16, 1: 32}.get(jnp.dtype(dtype).itemsize, 8)


def _pick_cols(n: int, sub: int) -> int:
    """Pick a lane-dense column count for a (n//cols, cols) slab.

    Preference order (largest cols within each tier, capped at 4096):
      1. cols % 128 == 0, rows % sub == 0 and rows >= 2*sub (splittable -> 2 TCs)
      2. cols % 128 == 0, rows % sub == 0                   (sublane-dense)
      3. cols % 128 == 0                                    (lane-dense only)
      0 if no multiple-of-128 divisor exists.
    """
    best_split = 0
    best_dense = 0
    best_any = 0
    c = 128
    cap = min(n, 4096)
    while c <= cap:
        if n % c == 0:
            best_any = c
            rows = n // c
            if rows % sub == 0:
                best_dense = c
                if rows >= 2 * sub:
                    best_split = c
        c += 128
    return best_split or best_dense or best_any


def _mish_2d(slab: jax.Array, sub: int, donate_input: bool = False) -> jax.Array:
    rows, cols = slab.shape
    itemsize = jnp.dtype(slab.dtype).itemsize

    # Rows per block: target ~4 MiB, rounded down to a sublane multiple.
    tr = max(sub, (_TARGET_BLOCK_BYTES // (cols * itemsize)) // sub * sub)
    if tr >= rows:
        if rows >= 2 * sub:
            # Split into >= 2 balanced grid steps so the 'parallel' axis can
            # shard across both TensorCores on v7x.
            half = -(-rows // 2)              # ceil(rows / 2)
            tr = -(-half // sub) * sub        # round up to sublane multiple
        else:
            tr = rows                         # single, full-extent block (legal)

    grid = (pl.cdiv(rows, tr),)  # Pallas masks the ragged trailing block

    n = rows * cols
    cost = pl.CostEstimate(
        flops=12 * n,
        transcendentals=n,
        bytes_accessed=2 * n * itemsize,
    )

    return pl.pallas_call(
        _mish_kernel,
        out_shape=jax.ShapeDtypeStruct((rows, cols), slab.dtype),
        grid_spec=pltpu.PrefetchScalarGridSpec(
            num_scalar_prefetch=0,
            grid=grid,
            in_specs=[pl.BlockSpec((tr, cols), lambda i: (i, 0))],
            out_specs=pl.BlockSpec((tr, cols), lambda i: (i, 0)),
        ),
        compiler_params=pltpu.CompilerParams(
            dimension_semantics=("parallel",),
            vmem_limit_bytes=_VMEM_LIMIT_BYTES,
        ),
        cost_estimate=cost,
        input_output_aliases=({0: 0} if donate_input else {}),
    )(slab)


def mish(x: jax.Array, donate_input: bool = False) -> jax.Array:
    """Applies Mish elementwise to an NCHW (or any-shape) array via Pallas.

    Set donate_input=True only if the caller actually donates x's buffer; the
    output then reuses the input HBM allocation (halves peak footprint).
    """
    orig_shape = x.shape
    n = x.size
    if n == 0:
        return x

    sub = _sublane_multiple(x.dtype)
    cols = _pick_cols(n, sub)
    if cols:
        # Common path: free reshape to a lane-dense (and usually sublane-dense)
        # slab, no extra HBM passes.
        slab = x.reshape(n // cols, cols)
        return _mish_2d(slab, sub, donate_input).reshape(orig_shape)

    # Fallback (numel has no multiple-of-128 divisor, rare): run the kernel on
    # the aligned prefix and compute the tiny (< sub*128 elem) tail with plain
    # jnp -- no full-tensor pad/slice HBM round trips.
    flat = x.reshape(-1)
    tile = sub * 128
    n_main = (n // tile) * tile
    if n_main == 0:
        y = flat * jnp.tanh(jax.nn.softplus(flat))
        return y.reshape(orig_shape)
    head = _mish_2d(flat[:n_main].reshape(n_main // 128, 128), sub).reshape(-1)
    tail = flat[n_main:]
    tail = tail * jnp.tanh(jax.nn.softplus(tail))
    return jnp.concatenate([head, tail]).reshape(orig_shape)


if __name__ == "__main__":
    key = jax.random.PRNGKey(0)
    # NCHW input, as the PyTorch module would receive.
    x = jax.random.normal(key, (2, 4, 16, 16), dtype=jnp.float32)

    y = mish(x)
    y = jax.block_until_ready(y)

    # Sanity check against a pure-JAX reference.
    ref = x * jnp.tanh(jax.nn.softplus(x))
    assert y.shape == x.shape and y.dtype == x.dtype
    assert jnp.allclose(y, ref, atol=1e-5, rtol=1e-5)

    print("KERNEL_OK")
</pallas_src>

<mosaic_0001>
module attributes {stable_mosaic.version = 11 : i64} {
  func.func @_mish_kernel(%arg0: i32, %arg1: memref<8x128xf32, #tpu.memory_space<vmem>>, %arg2: memref<8x128xf32, #tpu.memory_space<vmem>>) attributes {dimension_semantics = [#tpu.dimension_semantics<parallel>], iteration_bounds = array<i64: 2>, scalar_prefetch = 0 : i64, scratch_operands = 0 : i64, tpu.core_type = #tpu.core_type<tc>, window_params = [{transform_indices = @transform_0, window_bounds = array<i64: 8, 128>}, {transform_indices = @transform_1, window_bounds = array<i64: 8, 128>}]} {
    %c0 = arith.constant 0 : index
    %c0_0 = arith.constant 0 : index
    %0 = vector.load %arg1[%c0, %c0_0] : memref<8x128xf32, #tpu.memory_space<vmem>>, vector<8x128xf32>
    %1 = math.absf %0 : vector<8x128xf32>
    %cst = arith.constant 0.000000e+00 : f32
    %2 = vector.broadcast %cst : f32 to vector<8x128xf32>
    %3 = arith.subf %2, %1 : vector<8x128xf32>
    %4 = math.exp %3 : vector<8x128xf32>
    %5 = arith.mulf %4, %4 : vector<8x128xf32>
    %cst_1 = arith.constant 0.000000e+00 : f32
    %6 = vector.broadcast %cst_1 : f32 to vector<8x128xf32>
    %7 = arith.cmpf oge, %0, %6 : vector<8x128xf32>
    %cst_2 = arith.constant 2.000000e+00 : f32
    %8 = vector.broadcast %cst_2 : f32 to vector<8x128xf32>
    %9 = arith.mulf %8, %4 : vector<8x128xf32>
    %cst_3 = arith.constant 1.000000e+00 : f32
    %10 = vector.broadcast %cst_3 : f32 to vector<8x128xf32>
    %11 = arith.addf %10, %9 : vector<8x128xf32>
    %cst_4 = arith.constant 2.000000e+00 : f32
    %12 = vector.broadcast %cst_4 : f32 to vector<8x128xf32>
    %13 = arith.mulf %12, %4 : vector<8x128xf32>
    %14 = arith.addf %5, %13 : vector<8x128xf32>
    %15 = arith.select %7, %11, %14 : vector<8x128xi1>, vector<8x128xf32>
    %cst_5 = arith.constant 2.000000e+00 : f32
    %16 = vector.broadcast %cst_5 : f32 to vector<8x128xf32>
    %17 = arith.mulf %16, %5 : vector<8x128xf32>
    %cst_6 = arith.constant 2.000000e+00 : f32
    %18 = vector.broadcast %cst_6 : f32 to vector<8x128xf32>
    %19 = arith.select %7, %17, %18 : vector<8x128xi1>, vector<8x128xf32>
    %20 = arith.addf %15, %19 : vector<8x128xf32>
    %21 = tpu.reciprocal %20 {approx = true} : vector<8x128xf32> -> vector<8x128xf32>
    %22 = arith.mulf %20, %21 : vector<8x128xf32>
    %cst_7 = arith.constant 2.000000e+00 : f32
    %23 = vector.broadcast %cst_7 : f32 to vector<8x128xf32>
    %24 = arith.subf %23, %22 : vector<8x128xf32>
    %25 = arith.mulf %21, %24 : vector<8x128xf32>
    %26 = arith.mulf %0, %15 : vector<8x128xf32>
    %27 = arith.mulf %26, %25 : vector<8x128xf32>
    %c0_8 = arith.constant 0 : index
    %c0_9 = arith.constant 0 : index
    %28 = vector.load %arg2[%c0_8, %c0_9] : memref<8x128xf32, #tpu.memory_space<vmem>>, vector<8x128xf32>
    tpu.vector_store %arg2[%c0_8, %c0_9], %27 {strides = array<i32>} : memref<8x128xf32, #tpu.memory_space<vmem>>, vector<8x128xf32>,
    return
  }
  func.func @transform_0(%arg0: i32) -> (i32, i32) {
    %c0_i32 = arith.constant 0 : i32
    %c0_i32_0 = arith.constant 0 : i32
    return %arg0, %c0_i32 : i32, i32
  }
  func.func @transform_1(%arg0: i32) -> (i32, i32) {
    %c0_i32 = arith.constant 0 : i32
    %c0_i32_0 = arith.constant 0 : i32
    return %arg0, %c0_i32 : i32, i32
  }
}

</mosaic_0001>

<llo_original>
// kernel: tpu_custom_call.1
$region0: #{tpu_custom_call.1}
  #allocation0 [shape = 'u32[]', space=smem, size = 0x4, offset = 0x4, fixed_abs, tag = 'smem constant byte address 0x4 - core index']
  #allocation1 [shape = 'u32[72,128]{1,0:T(1,128)}', space=vmem, size = 0x9000, scoped, tag = 'internal scratch']
  %s0 = inlined_call_operand.hbm [shape: f32[16,128], index: 0, kind: input, shape index: {}]
  %s1 = inlined_call_operand.hbm [shape: f32[16,128], index: 1, kind: output, shape index: {}]
  %s2 = sld [smem:[#allocation0]]
  $region41: #{tpu_custom_call.1} parent=0
    _
  %s4 = ssub.s32 1, %s2
  %s5 = scalar_select 0, %s4, %s2
  $region1: #{tpu_custom_call.1} parent=0
    #allocation2 [shape = 'u8[8192]{0}', space=vmem, size = 0x2000, scoped, tag = 'input window, operand 0']
    #allocation3 [shape = 's32[2]{0}', space=sflag, size = 0x8, scoped, tag = 'scoped memory for tpu_custom_call.1']
    #allocation4 [shape = 's32[2]{0}', space=sflag, size = 0x8, scoped, tag = 'scoped memory for tpu_custom_call.1']
    #allocation5 [shape = 'u8[8192]{0}', space=vmem, size = 0x2000, scoped, tag = 'output window, operand 0']
    %6 = vsyncpa [#allocation3], 0
    %s7 = scalar_lea.sflag [#allocation3], 1
    %8 = vsyncpa %s7, 0
    %9 = vsyncpa [#allocation4], 0
    %s10 = scalar_lea.sflag [#allocation4], 1
    %11 = vsyncpa %s10, 0
    loop: start=0, step=1, limit=4
    $region2: #{tpu_custom_call.1} parent=1 // loop_pre_header
      _
    $region3: #{tpu_custom_call.1} parent=1 // loop_header
      %s13 = sphi 0, %s17
      %p14 = scmp.ge.s32.totalorder %s13, 4
      %s23 = sphi 0, %s25
      %s26 = sphi 0, %s23
      %s27 = sphi 0, %s26
      %s43 = sphi 0, %s27
      %s49 = sphi 0, %s51
      %s52 = sphi 0, %s49
      %s53 = sphi 0, %s52
      %s69 = sphi 0, %s53
    $region4: #{tpu_custom_call.1} parent=1 // loop_header_branch
      %16 = sbr.rel (%p14) target = $region8
    $region5: #{tpu_custom_call.1} parent=1 // loop_body
      %s18 = ssub.s32 %s13, 1
      %s19 = ssub.s32 %s13, 2
      %s20 = sadd.s32 %s13, 1
      %s21 = ssub.s32 %s13, %s20
      %p22 = scmp.eq.s32.totalorder %s21, 0
      %s24 = sadd.s32 %s23, 1
      %s25 = scalar_select %p22, %s23, %s24
      %p28 = pneg %p22
      %p29 = scmp.eq.s32.totalorder %s13, 1
      %p30 = por %p28, %p29
      %p31 = scmp.ne.s32.totalorder %s23, %s26
      %p32 = scmp.eq.s32.totalorder %s13, 0
      %p33 = por %p31, %p32
      %p34 = scmp.ne.s32.totalorder %s23, %s26
      %p35 = scmp.eq.s32.totalorder %s18, 1
      %p36 = por %p34, %p35
      %p37 = scmp.ne.s32.totalorder %s26, %s27
      %p38 = scmp.eq.s32.totalorder %s18, 0
      %p39 = por %p37, %p38
      %p40 = scmp.ne.s32.totalorder %s26, %s27
      %p41 = scmp.eq.s32.totalorder %s19, 1
      %p42 = por %p40, %p41
      %p44 = scmp.ne.s32.totalorder %s27, %s43
      %p45 = scmp.eq.s32.totalorder %s19, 0
      %p46 = por %p44, %p45
      %s47 = ssub.s32 %s13, %s20
      %p48 = scmp.eq.s32.totalorder %s47, 0
      %s50 = sadd.s32 %s49, 1
      %s51 = scalar_select %p48, %s49, %s50
      %p54 = pneg %p48
      %p55 = scmp.eq.s32.totalorder %s13, 1
      %p56 = por %p54, %p55
      %p57 = scmp.ne.s32.totalorder %s49, %s52
      %p58 = scmp.eq.s32.totalorder %s13, 0
      %p59 = por %p57, %p58
      %p60 = scmp.ne.s32.totalorder %s49, %s52
      %p61 = scmp.eq.s32.totalorder %s18, 1
      %p62 = por %p60, %p61
      %p63 = scmp.ne.s32.totalorder %s52, %s53
      %p64 = scmp.eq.s32.totalorder %s18, 0
      %p65 = por %p63, %p64
      %p66 = scmp.ne.s32.totalorder %s52, %s53
      %p67 = scmp.eq.s32.totalorder %s19, 1
      %p68 = por %p66, %p67
      %p70 = scmp.ne.s32.totalorder %s53, %s69
      %p71 = scmp.eq.s32.totalorder %s19, 0
      %p72 = por %p70, %p71
      %p73 = scmp.le.s32.totalorder 1, %s13
      %p74 = scmp.lt.s32.totalorder %s13, 3
      %p75 = pnand %p73, %p74
      %p76 = pneg %p75
      // Predicated region
      $region9: #{tpu_custom_call.1} parent=5 // pred_check
        _
      $region10: #{tpu_custom_call.1} parent=5 // pred_check_branch
        %78 = sbr.rel (%p75) target = $region12
      $region11: #{tpu_custom_call.1} parent=5 // pred_region
        %s79 = ssub.s32 %s13, 1
      $region12: #{tpu_custom_call.1} parent=5 // pred_fallthru
        _
      %p80 = scmp.lt.s32.totalorder %s13, 2
      // Predicated region
      $region13: #{tpu_custom_call.1} parent=5 // pred_check
        %p81 = pneg %p80
      $region14: #{tpu_custom_call.1} parent=5 // pred_check_branch
        %83 = sbr.rel (%p81) target = $region16
      $region15: #{tpu_custom_call.1} parent=5 // pred_region
        // Predicated region
        $region17: #{tpu_custom_call.1} parent=15 // pred_check
          %p84 = pneg %p33
        $region18: #{tpu_custom_call.1} parent=15 // pred_check_branch
          %86 = sbr.rel (%p84) target = $region20
        $region19: #{tpu_custom_call.1} parent=15 // pred_region
          %s87 = sand.u32 %s23, 1
          %s88 = scalar_lea.sflag [#allocation3], %s87
          %s89 = sand.u32 %s23, 1
          %s90 = smul.addr %s89, 8
          %s91 = scalar_lea.vmem [#allocation2], %s90
          %93 = vsyncadd %s88, 0
          %s94 = smul.addr %s13, 8
          %s95 = scalar_lea.hbm %s0, %s94
          %s97 = sshll.u32 %s95, 4
          %s98 = int_to_ptr.hbm [resolvable:$true] %s97
          %s99 = sshll.u32 %s91, 4
          %s100 = int_to_ptr.vmem [resolvable:$true] %s99
          %102 = dma.hbm_to_vmem [thread:$0]  %s98, 128, %s100, %s88
        $region20: #{tpu_custom_call.1} parent=15 // pred_fallthru
          _
      $region16: #{tpu_custom_call.1} parent=5 // pred_fallthru
        _
      %p103 = scmp.le.s32.totalorder 1, %s13
      %p104 = scmp.lt.s32.totalorder %s13, 3
      %p105 = pnand %p103, %p104
      %p106 = pneg %p105
      // Predicated region
      $region21: #{tpu_custom_call.1} parent=5 // pred_check
        _
      $region22: #{tpu_custom_call.1} parent=5 // pred_check_branch
        %108 = sbr.rel (%p105) target = $region24
      $region23: #{tpu_custom_call.1} parent=5 // pred_region
        %s109 = ssub.s32 %s13, 1
        %s110 = sand.u32 %s26, 1
        %s111 = scalar_lea.sflag [#allocation3], %s110
        %s112 = sand.u32 %s26, 1
        %s113 = smul.addr %s112, 8
        %s114 = scalar_lea.vmem [#allocation2], %s113
        // Predicated region
        $region25: #{tpu_custom_call.1} parent=23 // pred_check
          %p115 = pneg %p39
        $region26: #{tpu_custom_call.1} parent=23 // pred_check_branch
          %117 = sbr.rel (%p115) target = $region28
        $region27: #{tpu_custom_call.1} parent=23 // pred_region
          %119 = dma.done %s111, 128
        $region28: #{tpu_custom_call.1} parent=23 // pred_fallthru
          _
        %s120 = sand.u32 %s26, 1
        %s121 = scalar_lea.sflag [#allocation3], %s120
        %s122 = sand.u32 %s26, 1
        %s123 = smul.addr %s122, 8
        %s124 = scalar_lea.vmem [#allocation2], %s123
        %p125 = pneg %p39
        %p126 = pneg %p36
        %p127 = pneg %p65
        %p128 = pneg %p62
        %s129 = sand.u32 %s52, 1
        %s130 = scalar_lea.sflag [#allocation4], %s129
        %s131 = sand.u32 %s52, 1
        %s132 = smul.addr %s131, 8
        %s133 = scalar_lea.vmem [#allocation5], %s132
        %v134 = vld [vmem:[%s114] sm:$0xff]
        %v135 = vand.u32 2147483647, %v134
        %v136 = vsub.f32 0.0, %v135
        %v137 = vmul.f32 %v136, 1.442695
        %v138 = vpow.pop %v137
        %v139 = vmul.f32 %v138, %v138
        %vm140 = vcmp.ge.f32.partialorder %v134, 0.0
        %v141 = vmul.f32 %v138, 2.0
        %v142 = vadd.f32 %v141, 1.0
        %v143 = vadd.f32 %v139, %v141
        %v144 = vsel %vm140, %v142, %v143
        %v145 = vmul.f32 %v139, 2.0
        %v146 = vsel %vm140, %v145, 2.0
        %v147 = vadd.f32 %v144, %v146
        %v148 = vrcp.pop %v147
        %v149 = vmul.f32 %v147, %v148
        %v150 = vsub.f32 2.0, %v149
        %v151 = vmul.f32 %v148, %v150
        %v152 = vmul.f32 %v134, %v144
        %v153 = vmul.f32 %v152, %v151
        %154 = vst [vmem:[%s133] sm:$0xff] %v153
        %s155 = sand.u32 %s52, 1
        %s156 = scalar_lea.sflag [#allocation4], %s155
        %s157 = sand.u32 %s52, 1
        %s158 = smul.addr %s157, 8
        %s159 = scalar_lea.vmem [#allocation5], %s158
        // Predicated region
        $region29: #{tpu_custom_call.1} parent=23 // pred_check
          %p160 = pneg %p62
        $region30: #{tpu_custom_call.1} parent=23 // pred_check_branch
          %162 = sbr.rel (%p160) target = $region32
        $region31: #{tpu_custom_call.1} parent=23 // pred_region
          %164 = vsyncadd %s156, 0
          %s165 = smul.addr %s18, 8
          %s166 = scalar_lea.hbm %s1, %s165
          %s168 = sshll.u32 %s159, 4
          %s169 = int_to_ptr.vmem [resolvable:$true] %s168
          %s170 = sshll.u32 %s166, 4
          %s171 = int_to_ptr.hbm [resolvable:$true] %s170
          %173 = dma.vmem_to_hbm [thread:$0]  %s169, 128, %s171, %s156
        $region32: #{tpu_custom_call.1} parent=23 // pred_fallthru
          _
      $region24: #{tpu_custom_call.1} parent=5 // pred_fallthru
        _
      %p174 = scmp.le.s32.totalorder 2, %s13
      // Predicated region
      $region33: #{tpu_custom_call.1} parent=5 // pred_check
        %p175 = pneg %p174
      $region34: #{tpu_custom_call.1} parent=5 // pred_check_branch
        %177 = sbr.rel (%p175) target = $region36
      $region35: #{tpu_custom_call.1} parent=5 // pred_region
        %s178 = ssub.s32 %s13, 2
        // Predicated region
        $region37: #{tpu_custom_call.1} parent=35 // pred_check
          %p179 = pneg %p68
        $region38: #{tpu_custom_call.1} parent=35 // pred_check_branch
          %181 = sbr.rel (%p179) target = $region40
        $region39: #{tpu_custom_call.1} parent=35 // pred_region
          %s182 = sand.u32 %s53, 1
          %s183 = scalar_lea.sflag [#allocation4], %s182
          %s184 = sand.u32 %s53, 1
          %s185 = smul.addr %s184, 8
          %s186 = scalar_lea.vmem [#allocation5], %s185
          %188 = dma.done %s183, 128
        $region40: #{tpu_custom_call.1} parent=35 // pred_fallthru
          _
      $region36: #{tpu_custom_call.1} parent=5 // pred_fallthru
        _
    $region6: #{tpu_custom_call.1} parent=1 // loop_footer
      %s17 = sadd.s32 1, %s13
    $region7: #{tpu_custom_call.1} parent=1 // loop_footer_branch
      %12 = sbr.rel target = $region3
    $region8: #{tpu_custom_call.1} parent=1 // loop_exit
      _
    %189 = vsyncpa [#allocation3], 1
    %s190 = scalar_lea.sflag [#allocation3], 1
    %191 = vsyncpa %s190, 1
    %192 = vsyncpa [#allocation4], 1
    %s193 = scalar_lea.sflag [#allocation4], 1
    %194 = vsyncpa %s193, 1

</llo_original>
